<compile_context>
chip_gen: v6e
topology: v6e:2x2x1
jax: 0.10.0
libtpu: 0.0.40
codegen_flags: <defaults>
</compile_context>

<pallas_src>
import functools
import math

import jax
import jax.numpy as jnp
from jax import lax
from jax.experimental import pallas as pl
from jax.experimental.pallas import tpu as pltpu


_LANE = 128
_SUBLANE = 8


def _round_up(v, m):
    return (v + m - 1) // m * m


def _gelu(x, approximate):
    if approximate:
        # tanh-approx GELU (EUP path, cheaper on v5e) — changes numerics, so gated.
        return jax.nn.gelu(x, approximate=True)
    # PyTorch nn.GELU default: exact erf GELU (computed in f32).
    return 0.5 * x * (1.0 + lax.erf(x * (1.0 / math.sqrt(2.0))))


def _mlp_kernel(x_ref, w1_ref, b1_ref, w2_ref, b2_ref, o_ref, acc_ref, *,
                approximate):
    # x_ref : (TM, C_in_p)     resident across the inner h axis (constant index)
    # w1_ref: (C_in_p, TH)     streamed per h step
    # b1_ref: (1, TH)          streamed per h step
    # w2_ref: (TH, C_out_p)    streamed per h step
    # b2_ref: (1, C_out_p)     constant
    # o_ref : (TM, C_out_p)    written once, at the last h step
    # acc_ref: (TM, C_out_p)   f32 VMEM accumulator scratch
    h_idx = pl.program_id(1)

    @pl.when(h_idx == 0)
    def _():
        acc_ref[...] = jnp.zeros_like(acc_ref)

    # Feed the MXU bf16 operands, accumulate in f32.
    xc = x_ref[...].astype(w1_ref.dtype)
    h = jnp.dot(xc, w1_ref[...], preferred_element_type=jnp.float32)
    h = h + b1_ref[...].astype(jnp.float32)
    h = _gelu(h, approximate)
    # Dropout p=0.0 is the identity -> no-op.
    acc_ref[...] += jnp.dot(h.astype(w2_ref.dtype), w2_ref[...],
                            preferred_element_type=jnp.float32)

    @pl.when(h_idx == pl.num_programs(1) - 1)
    def _():
        y = acc_ref[...] + b2_ref[...].astype(jnp.float32)
        o_ref[...] = y.astype(o_ref.dtype)


def _vmem_capacity_bytes():
    try:
        return int(pltpu.get_tpu_info().vmem_capacity_bytes)
    except Exception:
        return 64 << 20  # conservative (v7x per-TC)


def _choose_tiles(M, C_in_p, H_p, C_out_p, xsz, wsz, bsz, tm, th):
    """Pick (TM, TH, vmem_limit) from static shapes and the VMEM capacity."""
    cap = _vmem_capacity_bytes()
    target = int(cap * 0.6)  # leave headroom for compiler scratch

    # Hidden tile: largest of {512, 256, 128} that divides H_p (H_p % 128 == 0).
    if th is None:
        th = next(t for t in (512, 256, 128) if H_p % t == 0)
    TH = min(int(th), H_p)

    # Row tile: big on 128-MiB parts (v5e/v6e), moderate on 64-MiB v7x.
    TM = int(tm) if tm is not None else (512 if cap >= (96 << 20) else 256)
    TM = min(TM, _round_up(M, _SUBLANE))
    # v7x megacore: keep at least 2 row steps so both TensorCores get work.
    if M > _SUBLANE and pl.cdiv(M, TM) < 2:
        TM = _round_up(pl.cdiv(M, 2), _SUBLANE)

    def budget(tm_, th_):
        return (2 * tm_ * C_in_p * xsz                        # x tile (double-buffered)
                + 2 * (C_in_p * th_ + th_ * C_out_p) * wsz    # W1/W2 tiles (double-buffered)
                + 2 * (th_ + C_out_p) * bsz                   # bias tiles
                + 2 * tm_ * C_out_p * xsz                     # out tile (double-buffered)
                + tm_ * C_out_p * 4                           # f32 accumulator scratch
                + 3 * tm_ * th_ * 4                           # f32 hidden + GELU temporaries
                + tm_ * (C_in_p + th_) * 2)                   # bf16 casts of x tile / hidden

    while budget(TM, TH) > target and TH > 128 and H_p % (TH // 2) == 0:
        TH //= 2
    while budget(TM, TH) > target and TM > 64:
        TM = max(64, TM // 2)

    vmem_limit = min(cap, max(int(budget(TM, TH) * 1.4) + (4 << 20), 32 << 20))
    return int(TM), int(TH), int(vmem_limit)


def prepare_mlp_params(w1, b1, w2, b2, mxu_dtype=jnp.bfloat16):
    """Pad features to multiples of 128 and cast weights to the MXU dtype.

    Done ONCE, outside the per-call forward, so padded/cast copies of the
    weights are not re-materialized through HBM every call.  Biases stay in
    their original dtype (they are added to f32 accumulators).
    """
    C_in, H = w1.shape
    C_out = w2.shape[1]
    C_in_p, H_p, C_out_p = (_round_up(v, _LANE) for v in (C_in, H, C_out))

    def pad2(a, r, c):
        if a.shape == (r, c):
            return a
        return jnp.pad(a, ((0, r - a.shape[0]), (0, c - a.shape[1])))

    w1p = pad2(w1, C_in_p, H_p).astype(mxu_dtype)
    w2p = pad2(w2, H_p, C_out_p).astype(mxu_dtype)
    b1p = pad2(b1.reshape(1, H), 1, H_p)
    b2p = pad2(b2.reshape(1, C_out), 1, C_out_p)
    return (w1p, b1p, w2p, b2p), int(C_out)


@functools.partial(
    jax.jit,
    static_argnames=("c_out", "tm", "th", "approximate", "vmem_limit"))
def _mlp_forward_impl(x, w1p, b1p, w2p, b2p, *, c_out, tm, th, approximate,
                      vmem_limit):
    lead = x.shape[:-1]
    C_in = x.shape[-1]
    M = math.prod(lead) if lead else 1
    C_in_p, H_p = w1p.shape
    C_out_p = w2p.shape[1]

    TM, TH = tm, th
    M_p = _round_up(max(M, 1), TM)

    x2d = x.reshape(M, C_in)
    if (M_p, C_in_p) != (M, C_in):   # skip the pad entirely when already aligned
        x2d = jnp.pad(x2d, ((0, M_p - M), (0, C_in_p - C_in)))

    num_m = M_p // TM
    num_h = H_p // TH
    grid = (num_m, num_h)

    xsz = x2d.dtype.itemsize
    wsz = w1p.dtype.itemsize
    bsz = b1p.dtype.itemsize

    cost = pl.CostEstimate(
        flops=2 * M_p * (C_in_p * H_p + H_p * C_out_p),
        transcendentals=M_p * H_p,
        bytes_accessed=(M_p * C_in_p * xsz
                        + num_m * (C_in_p * H_p + H_p * C_out_p) * wsz
                        + (H_p + C_out_p) * bsz
                        + M_p * C_out_p * xsz),
    )

    kernel = functools.partial(_mlp_kernel, approximate=approximate)

    # NOTE: b2 has a constant index_map; if the lowering double-buffers it the
    # cost is negligible (one padded row), so no pipeline_mode override here.
    out2d = pl.pallas_call(
        kernel,
        out_shape=jax.ShapeDtypeStruct((M_p, C_out_p), x.dtype),
        grid=grid,
        in_specs=[
            pl.BlockSpec((TM, C_in_p), lambda i, h: (i, 0)),    # x row tile (resident over h)
            pl.BlockSpec((C_in_p, TH), lambda i, h: (0, h)),    # W1 column tile
            pl.BlockSpec((1, TH), lambda i, h: (0, h)),         # b1 tile
            pl.BlockSpec((TH, C_out_p), lambda i, h: (h, 0)),   # W2 row tile
            pl.BlockSpec((1, C_out_p), lambda i, h: (0, 0)),    # b2 (constant)
        ],
        out_specs=pl.BlockSpec((TM, C_out_p), lambda i, h: (i, 0)),
        scratch_shapes=[pltpu.VMEM((TM, C_out_p), jnp.float32)],
        compiler_params=pltpu.CompilerParams(
            dimension_semantics=("parallel", "arbitrary"),
            vmem_limit_bytes=vmem_limit,
        ),
        cost_estimate=cost,
    )(x2d, w1p, b1p, w2p, b2p)

    out = out2d[:M, :c_out]
    return out.reshape(lead + (c_out,))


def mlp_forward(x, params, c_out, *, tm=None, th=None, approximate=False):
    """x: (..., C_in); params = prepare_mlp_params(...). Returns (..., C_out)."""
    w1p, b1p, w2p, b2p = params
    C_in_p, H_p = w1p.shape
    C_out_p = w2p.shape[1]
    M = math.prod(x.shape[:-1]) if x.ndim > 1 else 1
    TM, TH, vmem_limit = _choose_tiles(
        M, C_in_p, H_p, C_out_p,
        x.dtype.itemsize, w1p.dtype.itemsize, b1p.dtype.itemsize, tm, th)
    return _mlp_forward_impl(
        x, w1p, b1p, w2p, b2p, c_out=int(c_out), tm=TM, th=TH,
        approximate=bool(approximate), vmem_limit=vmem_limit)


def init_mlp_params(key, in_features, hidden_features, out_features,
                    dtype=jnp.float32):
    """nn.Linear-style init (uniform +-1/sqrt(fan_in)); weights in (in, out)."""
    k1, k2, k3, k4 = jax.random.split(key, 4)
    bound1 = 1.0 / math.sqrt(in_features)
    bound2 = 1.0 / math.sqrt(hidden_features)
    w1 = jax.random.uniform(k1, (in_features, hidden_features), dtype,
                            minval=-bound1, maxval=bound1)
    b1 = jax.random.uniform(k2, (hidden_features,), dtype,
                            minval=-bound1, maxval=bound1)
    w2 = jax.random.uniform(k3, (hidden_features, out_features), dtype,
                            minval=-bound2, maxval=bound2)
    b2 = jax.random.uniform(k4, (out_features,), dtype,
                            minval=-bound2, maxval=bound2)
    return w1, b1, w2, b2


if __name__ == "__main__":
    # Small shapes consistent with a transformer MLP block:
    B, N = 2, 8          # batch, sequence length
    C_in = 32            # in_features
    H = 4 * C_in         # hidden_features (typical 4x expansion)
    C_out = C_in         # out_features defaults to in_features

    key = jax.random.PRNGKey(0)
    kx, kp = jax.random.split(key)
    x = jax.random.normal(kx, (B, N, C_in), dtype=jnp.float32)
    w1, b1, w2, b2 = init_mlp_params(kp, C_in, H, C_out)

    # Pad + cast weights to bf16 once (outside the per-call forward).
    params, c_out = prepare_mlp_params(w1, b1, w2, b2, mxu_dtype=jnp.bfloat16)

    y = mlp_forward(x, params, c_out)
    jax.block_until_ready(y)

    # Pure-JAX f32 reference (exact erf GELU, drop=0 identity).  The kernel
    # uses bf16 MXU operands with f32 accumulation, so compare loosely.
    h_ref = x @ w1 + b1
    h_ref = 0.5 * h_ref * (1.0 + lax.erf(h_ref / jnp.sqrt(2.0)))
    y_ref = h_ref @ w2 + b2
    assert y.shape == (B, N, C_out)
    assert jnp.allclose(y, y_ref, atol=1e-2, rtol=1e-2), float(
        jnp.max(jnp.abs(y - y_ref)))

    # TODO(synk): dropout with p > 0 (training mode) would need pltpu.prng_seed
    # + stateful_bernoulli; p = 0.0 (the module default) is the identity.
    print("KERNEL_OK")
</pallas_src>

<mosaic_0001>
module attributes {stable_mosaic.version = 11 : i64} {
  func.func @_mlp_kernel(%arg0: i32, %arg1: i32, %arg2: memref<8x128xf32, #tpu.memory_space<vmem>>, %arg3: memref<128x128xbf16, #tpu.memory_space<vmem>>, %arg4: memref<1x128xf32, #tpu.memory_space<vmem>>, %arg5: memref<128x128xbf16, #tpu.memory_space<vmem>>, %arg6: memref<1x128xf32, #tpu.memory_space<vmem>>, %arg7: memref<8x128xf32, #tpu.memory_space<vmem>>, %arg8: memref<8x128xf32, #tpu.memory_space<vmem>>) attributes {dimension_semantics = [#tpu.dimension_semantics<parallel>, #tpu.dimension_semantics<arbitrary>], iteration_bounds = array<i64: 2, 1>, scalar_prefetch = 0 : i64, scratch_operands = 1 : i64, tpu.core_type = #tpu.core_type<tc>, window_params = [{transform_indices = @transform_0, window_bounds = array<i64: 8, 128>}, {transform_indices = @transform_1, window_bounds = array<i64: 128, 128>}, {transform_indices = @transform_2, window_bounds = array<i64: 1, 128>}, {transform_indices = @transform_3, window_bounds = array<i64: 128, 128>}, {pipeline_mode = #tpu.pipeline_mode<synchronous>, transform_indices = @transform_4, window_bounds = array<i64: 1, 128>}, {transform_indices = @transform_5, window_bounds = array<i64: 8, 128>}]} {
    %c0_i32 = arith.constant 0 : i32
    %0 = arith.cmpi eq, %arg1, %c0_i32 : i32
    %1 = arith.extui %0 : i1 to i32
    %c0_i32_0 = arith.constant 0 : i32
    %2 = arith.cmpi ne, %1, %c0_i32_0 : i32
    scf.if %2 {
      %cst_18 = arith.constant 0.000000e+00 : f32
      %27 = vector.broadcast %cst_18 : f32 to vector<8x128xf32>
      %c0_19 = arith.constant 0 : index
      %c0_20 = arith.constant 0 : index
      %28 = vector.load %arg8[%c0_19, %c0_20] : memref<8x128xf32, #tpu.memory_space<vmem>>, vector<8x128xf32>
      tpu.vector_store %arg8[%c0_19, %c0_20], %27 {strides = array<i32>} : memref<8x128xf32, #tpu.memory_space<vmem>>, vector<8x128xf32>,
    } else {
    }
    %c0 = arith.constant 0 : index
    %c0_1 = arith.constant 0 : index
    %3 = vector.load %arg2[%c0, %c0_1] : memref<8x128xf32, #tpu.memory_space<vmem>>, vector<8x128xf32>
    %4 = arith.truncf %3 : vector<8x128xf32> to vector<8x128xbf16>
    %c0_2 = arith.constant 0 : index
    %c0_3 = arith.constant 0 : index
    %5 = vector.load %arg3[%c0_2, %c0_3] : memref<128x128xbf16, #tpu.memory_space<vmem>>, vector<128x128xbf16>
    %cst = arith.constant dense<0.000000e+00> : vector<8x128xf32>
    %6 = tpu.matmul %4, %5, %cst {dimension_numbers = #tpu.dot_dimension_numbers<[1], [0], [0], [1], [0, 0, 1, 1], [], []>} : vector<8x128xbf16>, vector<128x128xbf16>, vector<8x128xf32> -> vector<8x128xf32>
    %c0_4 = arith.constant 0 : index
    %c0_5 = arith.constant 0 : index
    %7 = vector.load %arg4[%c0_4, %c0_5] : memref<1x128xf32, #tpu.memory_space<vmem>>, vector<1x128xf32>
    %8 = vector.broadcast %7 : vector<1x128xf32> to vector<8x128xf32>
    %9 = arith.addf %6, %8 : vector<8x128xf32>
    %cst_6 = arith.constant 5.000000e-01 : f32
    %10 = vector.broadcast %cst_6 : f32 to vector<8x128xf32>
    %11 = arith.mulf %10, %9 : vector<8x128xf32>
    %cst_7 = arith.constant 0.707106769 : f32
    %12 = vector.broadcast %cst_7 : f32 to vector<8x128xf32>
    %13 = arith.mulf %9, %12 : vector<8x128xf32>
    %14 = math.erf %13 : vector<8x128xf32>
    %cst_8 = arith.constant 1.000000e+00 : f32
    %15 = vector.broadcast %cst_8 : f32 to vector<8x128xf32>
    %16 = arith.addf %15, %14 : vector<8x128xf32>
    %17 = arith.mulf %11, %16 : vector<8x128xf32>
    %c0_9 = arith.constant 0 : index
    %c0_10 = arith.constant 0 : index
    %18 = vector.load %arg8[%c0_9, %c0_10] : memref<8x128xf32, #tpu.memory_space<vmem>>, vector<8x128xf32>
    %19 = arith.truncf %17 : vector<8x128xf32> to vector<8x128xbf16>
    %c0_11 = arith.constant 0 : index
    %c0_12 = arith.constant 0 : index
    %20 = vector.load %arg5[%c0_11, %c0_12] : memref<128x128xbf16, #tpu.memory_space<vmem>>, vector<128x128xbf16>
    %cst_13 = arith.constant dense<0.000000e+00> : vector<8x128xf32>
    %21 = tpu.matmul %19, %20, %cst_13 {dimension_numbers = #tpu.dot_dimension_numbers<[1], [0], [0], [1], [0, 0, 1, 1], [], []>} : vector<8x128xbf16>, vector<128x128xbf16>, vector<8x128xf32> -> vector<8x128xf32>
    %22 = arith.addf %18, %21 : vector<8x128xf32>
    %c0_14 = arith.constant 0 : index
    %c0_15 = arith.constant 0 : index
    %23 = vector.load %arg8[%c0_14, %c0_15] : memref<8x128xf32, #tpu.memory_space<vmem>>, vector<8x128xf32>
    tpu.vector_store %arg8[%c0_14, %c0_15], %22 {strides = array<i32>} : memref<8x128xf32, #tpu.memory_space<vmem>>, vector<8x128xf32>,
    %c0_i32_16 = arith.constant 0 : i32
    %24 = arith.cmpi eq, %arg1, %c0_i32_16 : i32
    %25 = arith.extui %24 : i1 to i32
    %c0_i32_17 = arith.constant 0 : i32
    %26 = arith.cmpi ne, %25, %c0_i32_17 : i32
    scf.if %26 {
      %c0_18 = arith.constant 0 : index
      %c0_19 = arith.constant 0 : index
      %27 = vector.load %arg8[%c0_18, %c0_19] : memref<8x128xf32, #tpu.memory_space<vmem>>, vector<8x128xf32>
      %c0_20 = arith.constant 0 : index
      %c0_21 = arith.constant 0 : index
      %28 = vector.load %arg6[%c0_20, %c0_21] : memref<1x128xf32, #tpu.memory_space<vmem>>, vector<1x128xf32>
      %29 = vector.broadcast %28 : vector<1x128xf32> to vector<8x128xf32>
      %30 = arith.addf %27, %29 : vector<8x128xf32>
      %c0_22 = arith.constant 0 : index
      %c0_23 = arith.constant 0 : index
      %31 = vector.load %arg7[%c0_22, %c0_23] : memref<8x128xf32, #tpu.memory_space<vmem>>, vector<8x128xf32>
      tpu.vector_store %arg7[%c0_22, %c0_23], %30 {strides = array<i32>} : memref<8x128xf32, #tpu.memory_space<vmem>>, vector<8x128xf32>,
    } else {
    }
    return
  }
  func.func @transform_0(%arg0: i32, %arg1: i32) -> (i32, i32) {
    %c0_i32 = arith.constant 0 : i32
    %c0_i32_0 = arith.constant 0 : i32
    return %arg0, %c0_i32 : i32, i32
  }
  func.func @transform_1(%arg0: i32, %arg1: i32) -> (i32, i32) {
    %c0_i32 = arith.constant 0 : i32
    %c0_i32_0 = arith.constant 0 : i32
    return %c0_i32, %arg1 : i32, i32
  }
  func.func @transform_2(%arg0: i32, %arg1: i32) -> (i32, i32) {
    %c0_i32 = arith.constant 0 : i32
    %c0_i32_0 = arith.constant 0 : i32
    return %c0_i32, %arg1 : i32, i32
  }
  func.func @transform_3(%arg0: i32, %arg1: i32) -> (i32, i32) {
    %c0_i32 = arith.constant 0 : i32
    %c0_i32_0 = arith.constant 0 : i32
    return %arg1, %c0_i32 : i32, i32
  }
  func.func @transform_4(%arg0: i32, %arg1: i32) -> (i32, i32) {
    %c0_i32 = arith.constant 0 : i32
    %c0_i32_0 = arith.constant 0 : i32
    %c0_i32_1 = arith.constant 0 : i32
    return %c0_i32, %c0_i32_0 : i32, i32
  }
  func.func @transform_5(%arg0: i32, %arg1: i32) -> (i32, i32) {
    %c0_i32 = arith.constant 0 : i32
    %c0_i32_0 = arith.constant 0 : i32
    return %arg0, %c0_i32 : i32, i32
  }
}

</mosaic_0001>

<llo_original>
// kernel: _mlp_forward_impl.1
$region0: #{_mlp_forward_impl.1}
  #allocation0 [shape = 'u32[]', space=smem, size = 0x4, offset = 0x4, fixed_abs, tag = 'smem constant byte address 0x4 - core index']
  #allocation1 [shape = 'u32[144,128]{1,0:T(1,128)}', space=vmem, size = 0x12000, scoped, tag = 'internal scratch']
  #allocation2 [shape = 'f32[8,128]{1,0:T(8,128)}', space=vmem, size = 0x1000, scoped, tag = 'scratch operand']
  %s0 = inlined_call_operand.vmem [shape: f32[16,128], index: 0, kind: input, shape index: {}]
  %s1 = inlined_call_operand.hbm [shape: bf16[128,128], index: 1, kind: input, shape index: {}]
  %s2 = inlined_call_operand.vmem [shape: f32[1,128], index: 2, kind: input, shape index: {}]
  %s3 = inlined_call_operand.hbm [shape: bf16[128,128], index: 3, kind: input, shape index: {}]
  %s4 = inlined_call_operand.vmem [shape: f32[1,128], index: 4, kind: input, shape index: {}]
  %s5 = inlined_call_operand.vmem [shape: f32[16,128], index: 5, kind: output, shape index: {}]
  %s6 = sld [smem:[#allocation0]]
  $region69: #{_mlp_forward_impl.1} parent=0
    _
  %s8 = ssub.s32 1, %s6
  %s9 = scalar_select 0, %s8, %s6
  $region1: #{_mlp_forward_impl.1} parent=0
    #allocation3 [shape = 'u8[32768]{0}', space=vmem, size = 0x8000, scoped, tag = 'input window, operand 1, single buffered']
    #allocation4 [shape = 's32[2]{0}', space=sflag, size = 0x8, scoped, tag = 'scoped memory for _mlp_forward_impl.1']
    #allocation5 [shape = 'u8[32768]{0}', space=vmem, size = 0x8000, scoped, tag = 'input window, operand 3, single buffered']
    #allocation6 [shape = 's32[1]{0}', space=sflag, size = 0x4, scoped, tag = 'scoped memory for _mlp_forward_impl.1']
    %10 = vsyncpa [#allocation4], 0
    %11 = vsyncpa [#allocation6], 0
    loop: start=0, step=1, limit=4
    $region2: #{_mlp_forward_impl.1} parent=1 // loop_pre_header
      _
    $region3: #{_mlp_forward_impl.1} parent=1 // loop_header
      %s13 = sphi 0, %s17
      %p14 = scmp.ge.s32.totalorder %s13, 4
      %s20 = sphi 0, %s32
      %s21 = sphi 0, %s28
      %s22 = sphi 0, %s20
      %s23 = sphi 0, %s21
      %s24 = sphi 0, %s22
      %s25 = sphi 0, %s23
      %s35 = sphi 0, %s37
      %s38 = sphi 0, %s35
      %s39 = sphi 0, %s38
      %s55 = sphi 0, %s39
      %s61 = sphi 0, %s63
      %s64 = sphi 0, %s61
      %s65 = sphi 0, %s64
      %s81 = sphi 0, %s65
      %s87 = sphi 0, %s89
      %s90 = sphi 0, %s87
      %s91 = sphi 0, %s90
      %s107 = sphi 0, %s91
      %s113 = sphi 0, %s115
      %s116 = sphi 0, %s113
      %s117 = sphi 0, %s116
      %s133 = sphi 0, %s117
      %s137 = sphi 0, %s137
      %s139 = sphi 0, %s137
      %s140 = sphi 0, %s139
      %s154 = sphi 0, %s140
      %s160 = sphi 0, %s162
      %s163 = sphi 0, %s160
      %s164 = sphi 0, %s163
      %s180 = sphi 0, %s164
    $region4: #{_mlp_forward_impl.1} parent=1 // loop_header_branch
      %16 = sbr.rel (%p14) target = $region8
    $region5: #{_mlp_forward_impl.1} parent=1 // loop_body
      %s18 = ssub.s32 %s13, 1
      %s19 = ssub.s32 %s13, 2
      %s26 = sadd.s32 1, %s21
      %p27 = scmp.ge.s32.totalorder %s26, 1
      %s28 = scalar_select %p27, 0, %s26
      %s29 = sadd.s32 1, %s20
      %s30 = scalar_select %p27, %s29, %s20
      %p31 = scmp.ge.s32.totalorder %s30, 2
      %s32 = scalar_select %p31, 0, %s30
      %s33 = ssub.s32 %s20, %s32
      %p34 = scmp.eq.s32.totalorder %s33, 0
      %s36 = sadd.s32 %s35, 1
      %s37 = scalar_select %p34, %s35, %s36
      %p40 = pneg %p34
      %p41 = scmp.eq.s32.totalorder %s13, 1
      %p42 = por %p40, %p41
      %p43 = scmp.ne.s32.totalorder %s35, %s38
      %p44 = scmp.eq.s32.totalorder %s13, 0
      %p45 = por %p43, %p44
      %p46 = scmp.ne.s32.totalorder %s35, %s38
      %p47 = scmp.eq.s32.totalorder %s18, 1
      %p48 = por %p46, %p47
      %p49 = scmp.ne.s32.totalorder %s38, %s39
      %p50 = scmp.eq.s32.totalorder %s18, 0
      %p51 = por %p49, %p50
      %p52 = scmp.ne.s32.totalorder %s38, %s39
      %p53 = scmp.eq.s32.totalorder %s19, 1
      %p54 = por %p52, %p53
      %p56 = scmp.ne.s32.totalorder %s39, %s55
      %p57 = scmp.eq.s32.totalorder %s19, 0
      %p58 = por %p56, %p57
      %s59 = ssub.s32 %s21, %s28
      %p60 = scmp.eq.s32.totalorder %s59, 0
      %s62 = sadd.s32 %s61, 1
      %s63 = scalar_select %p60, %s61, %s62
      %p66 = pneg %p60
      %p67 = scmp.eq.s32.totalorder %s13, 1
      %p68 = por %p66, %p67
      %p69 = scmp.ne.s32.totalorder %s61, %s64
      %p70 = scmp.eq.s32.totalorder %s13, 0
      %p71 = por %p69, %p70
      %p72 = scmp.ne.s32.totalorder %s61, %s64
      %p73 = scmp.eq.s32.totalorder %s18, 1
      %p74 = por %p72, %p73
      %p75 = scmp.ne.s32.totalorder %s64, %s65
      %p76 = scmp.eq.s32.totalorder %s18, 0
      %p77 = por %p75, %p76
      %p78 = scmp.ne.s32.totalorder %s64, %s65
      %p79 = scmp.eq.s32.totalorder %s19, 1
      %p80 = por %p78, %p79
      %p82 = scmp.ne.s32.totalorder %s65, %s81
      %p83 = scmp.eq.s32.totalorder %s19, 0
      %p84 = por %p82, %p83
      %s85 = ssub.s32 %s21, %s28
      %p86 = scmp.eq.s32.totalorder %s85, 0
      %s88 = sadd.s32 %s87, 1
      %s89 = scalar_select %p86, %s87, %s88
      %p92 = pneg %p86
      %p93 = scmp.eq.s32.totalorder %s13, 1
      %p94 = por %p92, %p93
      %p95 = scmp.ne.s32.totalorder %s87, %s90
      %p96 = scmp.eq.s32.totalorder %s13, 0
      %p97 = por %p95, %p96
      %p98 = scmp.ne.s32.totalorder %s87, %s90
      %p99 = scmp.eq.s32.totalorder %s18, 1
      %p100 = por %p98, %p99
      %p101 = scmp.ne.s32.totalorder %s90, %s91
      %p102 = scmp.eq.s32.totalorder %s18, 0
      %p103 = por %p101, %p102
      %p104 = scmp.ne.s32.totalorder %s90, %s91
      %p105 = scmp.eq.s32.totalorder %s19, 1
      %p106 = por %p104, %p105
      %p108 = scmp.ne.s32.totalorder %s91, %s107
      %p109 = scmp.eq.s32.totalorder %s19, 0
      %p110 = por %p108, %p109
      %s111 = ssub.s32 %s21, %s28
      %p112 = scmp.eq.s32.totalorder %s111, 0
      %s114 = sadd.s32 %s113, 1
      %s115 = scalar_select %p112, %s113, %s114
      %p118 = pneg %p112
      %p119 = scmp.eq.s32.totalorder %s13, 1
      %p120 = por %p118, %p119
      %p121 = scmp.ne.s32.totalorder %s113, %s116
      %p122 = scmp.eq.s32.totalorder %s13, 0
      %p123 = por %p121, %p122
      %p124 = scmp.ne.s32.totalorder %s113, %s116
      %p125 = scmp.eq.s32.totalorder %s18, 1
      %p126 = por %p124, %p125
      %p127 = scmp.ne.s32.totalorder %s116, %s117
      %p128 = scmp.eq.s32.totalorder %s18, 0
      %p129 = por %p127, %p128
      %p130 = scmp.ne.s32.totalorder %s116, %s117
      %p131 = scmp.eq.s32.totalorder %s19, 1
      %p132 = por %p130, %p131
      %p134 = scmp.ne.s32.totalorder %s117, %s133
      %p135 = scmp.eq.s32.totalorder %s19, 0
      %p136 = por %p134, %p135
      %s138 = sadd.s32 %s137, 1
      %p141 = scmp.eq.s32.totalorder %s13, 1
      %p142 = scmp.ne.s32.totalorder %s137, %s139
      %p143 = scmp.eq.s32.totalorder %s13, 0
      %p144 = por %p142, %p143
      %p145 = scmp.ne.s32.totalorder %s137, %s139
      %p146 = scmp.eq.s32.totalorder %s18, 1
      %p147 = por %p145, %p146
      %p148 = scmp.ne.s32.totalorder %s139, %s140
      %p149 = scmp.eq.s32.totalorder %s18, 0
      %p150 = por %p148, %p149
      %p151 = scmp.ne.s32.totalorder %s139, %s140
      %p152 = scmp.eq.s32.totalorder %s19, 1
      %p153 = por %p151, %p152
      %p155 = scmp.ne.s32.totalorder %s140, %s154
      %p156 = scmp.eq.s32.totalorder %s19, 0
      %p157 = por %p155, %p156
      %s158 = ssub.s32 %s20, %s32
      %p159 = scmp.eq.s32.totalorder %s158, 0
      %s161 = sadd.s32 %s160, 1
      %s162 = scalar_select %p159, %s160, %s161
      %p165 = pneg %p159
      %p166 = scmp.eq.s32.totalorder %s13, 1
      %p167 = por %p165, %p166
      %p168 = scmp.ne.s32.totalorder %s160, %s163
      %p169 = scmp.eq.s32.totalorder %s13, 0
      %p170 = por %p168, %p169
      %p171 = scmp.ne.s32.totalorder %s160, %s163
      %p172 = scmp.eq.s32.totalorder %s18, 1
      %p173 = por %p171, %p172
      %p174 = scmp.ne.s32.totalorder %s163, %s164
      %p175 = scmp.eq.s32.totalorder %s18, 0
      %p176 = por %p174, %p175
      %p177 = scmp.ne.s32.totalorder %s163, %s164
      %p178 = scmp.eq.s32.totalorder %s19, 1
      %p179 = por %p177, %p178
      %p181 = scmp.ne.s32.totalorder %s164, %s180
      %p182 = scmp.eq.s32.totalorder %s19, 0
      %p183 = por %p181, %p182
      %p184 = scmp.le.s32.totalorder 1, %s13
      %p185 = scmp.lt.s32.totalorder %s13, 3
      %p186 = pnand %p184, %p185
      %p187 = pneg %p186
      // Predicated region
      $region9: #{_mlp_forward_impl.1} parent=5 // pred_check
        _
      $region10: #{_mlp_forward_impl.1} parent=5 // pred_check_branch
        %189 = sbr.rel (%p186) target = $region12
      $region11: #{_mlp_forward_impl.1} parent=5 // pred_region
        %s190 = ssub.s32 %s13, 1
        // Predicated region
        $region13: #{_mlp_forward_impl.1} parent=11 // pred_check
          %p191 = pneg %p77
        $region14: #{_mlp_forward_impl.1} parent=11 // pred_check_branch
          %193 = sbr.rel (%p191) target = $region16
        $region15: #{_mlp_forward_impl.1} parent=11 // pred_region
          %s195 = ssub.s32 1024, 1024
          %196 = vsyncadd [#allocation4], %s195
          %s197 = smul.addr %s23, 64
          %s198 = scalar_lea.hbm %s1, %s197
          %s199 = sshll.u32 [#allocation3], 4
          %s200 = int_to_ptr.vmem [resolvable:$true] %s199
          %205 = dma.hbm_to_vmem [thread:$0]  %s198, 1024, %s200, [#allocation4], 64, 64, 4
        $region16: #{_mlp_forward_impl.1} parent=11 // pred_fallthru
          _
        // Predicated region
        $region17: #{_mlp_forward_impl.1} parent=11 // pred_check
          %p206 = pneg %p103
        $region18: #{_mlp_forward_impl.1} parent=11 // pred_check_branch
          %208 = sbr.rel (%p206) target = $region20
        $region19: #{_mlp_forward_impl.1} parent=11 // pred_region
          %p209 = scmp.lt.s32.totalorder %s23, 0
          %s210 = scalar_select %p209, %s23, 0
          %s211 = scalar_lea.vmem %s2, %s210
        $region20: #{_mlp_forward_impl.1} parent=11 // pred_fallthru
          _
        // Predicated region
        $region21: #{_mlp_forward_impl.1} parent=11 // pred_check
          %p212 = pneg %p129
        $region22: #{_mlp_forward_impl.1} parent=11 // pred_check_branch
          %214 = sbr.rel (%p212) target = $region24
        $region23: #{_mlp_forward_impl.1} parent=11 // pred_region
          %s215 = smul.u32 16, %s23
          %s217 = ssub.s32 1024, 1024
          %218 = vsyncadd [#allocation6], %s217
          %s219 = smul.addr %s215, 64
          %s220 = scalar_lea.hbm %s3, %s219
          %s221 = sshll.u32 [#allocation5], 4
          %s222 = int_to_ptr.vmem [resolvable:$true] %s221
          %227 = dma.hbm_to_vmem [thread:$0]  %s220, 1024, %s222, [#allocation6], 64, 64, 4
        $region24: #{_mlp_forward_impl.1} parent=11 // pred_fallthru
          _
        // Predicated region
        $region25: #{_mlp_forward_impl.1} parent=11 // pred_check
          %p228 = pneg %p150
        $region26: #{_mlp_forward_impl.1} parent=11 // pred_check_branch
          %230 = sbr.rel (%p228) target = $region28
        $region27: #{_mlp_forward_impl.1} parent=11 // pred_region
          _
        $region28: #{_mlp_forward_impl.1} parent=11 // pred_fallthru
          _
      $region12: #{_mlp_forward_impl.1} parent=5 // pred_fallthru
        _
      %p231 = scmp.lt.s32.totalorder %s13, 2
      // Predicated region
      $region29: #{_mlp_forward_impl.1} parent=5 // pred_check
        %p232 = pneg %p231
      $region30: #{_mlp_forward_impl.1} parent=5 // pred_check_branch
        %234 = sbr.rel (%p232) target = $region32
      $region31: #{_mlp_forward_impl.1} parent=5 // pred_region
        // Predicated region
        $region33: #{_mlp_forward_impl.1} parent=31 // pred_check
          %p235 = pneg %p45
        $region34: #{_mlp_forward_impl.1} parent=31 // pred_check_branch
          %237 = sbr.rel (%p235) target = $region36
        $region35: #{_mlp_forward_impl.1} parent=31 // pred_region
          %p238 = scmp.lt.s32.totalorder %s20, 1
          %s239 = scalar_select %p238, %s20, 1
          %s240 = smul.addr %s239, 8
          %s241 = scalar_lea.vmem %s0, %s240
        $region36: #{_mlp_forward_impl.1} parent=31 // pred_fallthru
          _
      $region32: #{_mlp_forward_impl.1} parent=5 // pred_fallthru
        _
      %p242 = scmp.le.s32.totalorder 1, %s13
      %p243 = scmp.lt.s32.totalorder %s13, 3
      %p244 = pnand %p242, %p243
      %p245 = pneg %p244
      // Predicated region
      $region37: #{_mlp_forward_impl.1} parent=5 // pred_check
        _
      $region38: #{_mlp_forward_impl.1} parent=5 // pred_check_branch
        %247 = sbr.rel (%p244) target = $region40
      $region39: #{_mlp_forward_impl.1} parent=5 // pred_region
        %s248 = ssub.s32 %s13, 1
        // Predicated region
        $region41: #{_mlp_forward_impl.1} parent=39 // pred_check
          %p249 = pneg %p77
        $region42: #{_mlp_forward_impl.1} parent=39 // pred_check_branch
          %251 = sbr.rel (%p249) target = $region44
        $region43: #{_mlp_forward_impl.1} parent=39 // pred_region
          %252 = dma.done [#allocation4], 1024
        $region44: #{_mlp_forward_impl.1} parent=39 // pred_fallthru
          _
        // Predicated region
        $region45: #{_mlp_forward_impl.1} parent=39 // pred_check
          %p253 = pneg %p129
        $region46: #{_mlp_forward_impl.1} parent=39 // pred_check_branch
          %255 = sbr.rel (%p253) target = $region48
        $region47: #{_mlp_forward_impl.1} parent=39 // pred_region
          %256 = dma.done [#allocation6], 1024
        $region48: #{_mlp_forward_impl.1} parent=39 // pred_fallthru
          _
        %p257 = scmp.lt.s32.totalorder %s22, 1
        %s258 = scalar_select %p257, %s22, 1
        %s259 = smul.addr %s258, 8
        %s260 = scalar_lea.vmem %s0, %s259
        %p261 = pneg %p51
        %p262 = pneg %p48
        %p263 = pneg %p77
        %p264 = pneg %p74
        %p265 = scmp.lt.s32.totalorder %s23, 0
        %s266 = scalar_select %p265, %s23, 0
        %s267 = scalar_lea.vmem %s2, %s266
        %p268 = pneg %p103
        %p269 = pneg %p100
        %p270 = pneg %p129
        %p271 = pneg %p126
        %p272 = pneg %p150
        %p273 = pneg %p147
        %p274 = pneg %p176
        %p275 = pneg %p173
        %p276 = scmp.lt.s32.totalorder %s22, 1
        %s277 = scalar_select %p276, %s22, 1
        %s278 = smul.addr %s277, 8
        %s279 = scalar_lea.vmem %s5, %s278
        %p280 = scmp.lt.s32.totalorder %s22, 1
        %s281 = scalar_select %p280, %s22, 1
        %s282 = smul.addr %s281, 8
        %s283 = scalar_lea.vmem %s0, %s282
        %p284 = scmp.lt.s32.totalorder %s23, 0
        %s285 = scalar_select %p284, %s23, 0
        %s286 = scalar_lea.vmem %s2, %s285
        %s287 = smul.u32 16, %s23
        %p288 = scmp.lt.s32.totalorder %s22, 1
        %s289 = scalar_select %p288, %s22, 1
        %s290 = smul.addr %s289, 8
        %s291 = scalar_lea.vmem %s5, %s290
        %p293 = scmp.eq.s32.totalorder %s23, 0
        // Predicated region
        $region49: #{_mlp_forward_impl.1} parent=39 // pred_check
          %p294 = pneg %p293
        $region50: #{_mlp_forward_impl.1} parent=39 // pred_check_branch
          %296 = sbr.rel (%p294) target = $region52
        $region51: #{_mlp_forward_impl.1} parent=39 // pred_region
          %297 = vst [vmem:[#allocation2] sm:$0xff] 0.0
        $region52: #{_mlp_forward_impl.1} parent=39 // pred_fallthru
          _
        %v298 = vld [vmem:[%s283] sm:$0xff]
        %v299 = vpack.c.bf16 %v298, %v298
        %v300 = vld [vmem:[#allocation3] sm:$0xf]
        %v301 = vld [vmem:[#allocation3 + $0x4] sm:$0xf]
        %v302 = vld [vmem:[#allocation3 + $0x8] sm:$0xf]
        %v303 = vld [vmem:[#allocation3 + $0xc] sm:$0xf]
        %v304 = vld [vmem:[#allocation3 + $0x10] sm:$0xf]
        %v305 = vld [vmem:[#allocation3 + $0x14] sm:$0xf]
        %v306 = vld [vmem:[#allocation3 + $0x18] sm:$0xf]
        %v307 = vld [vmem:[#allocation3 + $0x1c] sm:$0xf]
        %v308 = vld [vmem:[#allocation3 + $0x20] sm:$0xf]
        %v309 = vld [vmem:[#allocation3 + $0x24] sm:$0xf]
        %v310 = vld [vmem:[#allocation3 + $0x28] sm:$0xf]
        %v311 = vld [vmem:[#allocation3 + $0x2c] sm:$0xf]
        %v312 = vld [vmem:[#allocation3 + $0x30] sm:$0xf]
        %v313 = vld [vmem:[#allocation3 + $0x34] sm:$0xf]
        %v314 = vld [vmem:[#allocation3 + $0x38] sm:$0xf]
        %v315 = vld [vmem:[#allocation3 + $0x3c] sm:$0xf]
        %v316 = vld [vmem:[%s286] sm:$0x1]
        %v318 = vlaneseq
        %v319 = vshrl.u32 %v318, 7
        %v320 = vsub.s32 0, %v319
        %v321 = vrot.slane %v316, %v320
        %v339 = vunpack.c.l.b16 %v300
        %v340 = vunpack.c.l.b16 %v301
        %v341 = vunpack.c.l.b16 %v302
        %v342 = vunpack.c.l.b16 %v303
        %v343 = vunpack.c.l.b16 %v304
        %v344 = vunpack.c.l.b16 %v305
        %v345 = vunpack.c.l.b16 %v306
        %v346 = vunpack.c.l.b16 %v307
        %v347 = vunpack.c.l.b16 %v308
        %v348 = vunpack.c.l.b16 %v309
        %v349 = vunpack.c.l.b16 %v310
        %v350 = vunpack.c.l.b16 %v311
        %v351 = vunpack.c.l.b16 %v312
        %v352 = vunpack.c.l.b16 %v313
        %v353 = vunpack.c.l.b16 %v314
        %v354 = vunpack.c.l.b16 %v315
        %v355 = vpack.c.b16 %v340, %v339
        %v356 = vpack.c.b16 %v342, %v341
        %v357 = vpack.c.b16 %v344, %v343
        %v358 = vpack.c.b16 %v346, %v345
        %v359 = vpack.c.b16 %v348, %v347
        %v360 = vpack.c.b16 %v350, %v349
        %v361 = vpack.c.b16 %v352, %v351
        %v362 = vpack.c.b16 %v354, %v353
        %371 = vmatprep.subr.bf16.mxu0 0
        %372 = vmatpush1.bf16.msra.mxu0 %v362
        %373 = vmatprep.subr.bf16.mxu0 0
        %374 = vmatpush1.bf16.msra.mxu0 %v361
        %375 = vmatprep.subr.bf16.mxu0 0
        %376 = vmatpush1.bf16.msra.mxu0 %v360
        %377 = vmatprep.subr.bf16.mxu0 0
        %378 = vmatpush1.bf16.msra.mxu0 %v359
        %379 = vmatprep.subr.bf16.mxu0 0
        %380 = vmatpush1.bf16.msra.mxu0 %v358
        %381 = vmatprep.subr.bf16.mxu0 0
        %382 = vmatpush1.bf16.msra.mxu0 %v357
        %383 = vmatprep.subr.bf16.mxu0 0
        %384 = vmatpush1.bf16.msra.mxu0 %v356
        %385 = vmatprep.subr.bf16.mxu0 0
        %386 = vmatpush1.bf16.msra.mxu0 %v355
        %387 = vmatprep.subr.bf16.mxu0 0
        %388 = vmatpush2.bf16.msra.mxu0 0
        %389 = vmatprep.subr.bf16.mxu0 0
        %390 = vmatpush2.bf16.msra.mxu0 0
        %391 = vmatprep.subr.bf16.mxu0 0
        %392 = vmatpush2.bf16.msra.mxu0 0
        %393 = vmatprep.subr.bf16.mxu0 0
        %394 = vmatpush2.bf16.msra.mxu0 0
        %395 = vmatprep.subr.bf16.mxu0 0
        %396 = vmatpush2.bf16.msra.mxu0 0
        %397 = vmatprep.subr.bf16.mxu0 0
        %398 = vmatpush2.bf16.msra.mxu0 0
        %399 = vmatprep.subr.bf16.mxu0 0
        %400 = vmatpush2.bf16.msra.mxu0 0
        %401 = vmatprep.subr.bf16.mxu0 0
        %402 = vmatpush2.bf16.msra.mxu0 0
        %403 = vmatprep.mubr.bf16.mxu0 0
        %404 = vmatmul.mubr.bf16.gmra.mxu0 %v299
        %v405 = vpop.f32.mrf.mxu0
        %v406 = vadd.f32 %v321, %v405
        %v407 = vpop.f32.mrf.mxu0
        %v408 = vpop.f32.mrf.mxu0
        %v409 = vpop.f32.mrf.mxu0
        %410 = vdwg.mxu0
        %v411 = vmul.f32 %v406, 0.5
        %v412 = vmul.f32 %v406, 0.70710677
        %v413 = verf.f32.pop %v412
        %v414 = vadd.f32 %v413, 1.0
        %v415 = vmul.f32 %v411, %v414
        %v416 = vld [vmem:[#allocation2] sm:$0xff]
        %v417 = vpack.c.bf16 %v415, %v415
        %v418 = vld [vmem:[#allocation5] sm:$0xf]
        %v419 = vld [vmem:[#allocation5 + $0x4] sm:$0xf]
        %v420 = vld [vmem:[#allocation5 + $0x8] sm:$0xf]
        %v421 = vld [vmem:[#allocation5 + $0xc] sm:$0xf]
        %v422 = vld [vmem:[#allocation5 + $0x10] sm:$0xf]
        %v423 = vld [vmem:[#allocation5 + $0x14] sm:$0xf]
        %v424 = vld [vmem:[#allocation5 + $0x18] sm:$0xf]
        %v425 = vld [vmem:[#allocation5 + $0x1c] sm:$0xf]
        %v426 = vld [vmem:[#allocation5 + $0x20] sm:$0xf]
        %v427 = vld [vmem:[#allocation5 + $0x24] sm:$0xf]
        %v428 = vld [vmem:[#allocation5 + $0x28] sm:$0xf]
        %v429 = vld [vmem:[#allocation5 + $0x2c] sm:$0xf]
        %v430 = vld [vmem:[#allocation5 + $0x30] sm:$0xf]
        %v431 = vld [vmem:[#allocation5 + $0x34] sm:$0xf]
        %v432 = vld [vmem:[#allocation5 + $0x38] sm:$0xf]
        %v433 = vld [vmem:[#allocation5 + $0x3c] sm:$0xf]
        %v450 = vunpack.c.l.b16 %v418
        %v451 = vunpack.c.l.b16 %v419
        %v452 = vunpack.c.l.b16 %v420
        %v453 = vunpack.c.l.b16 %v421
        %v454 = vunpack.c.l.b16 %v422
        %v455 = vunpack.c.l.b16 %v423
        %v456 = vunpack.c.l.b16 %v424
        %v457 = vunpack.c.l.b16 %v425
        %v458 = vunpack.c.l.b16 %v426
        %v459 = vunpack.c.l.b16 %v427
        %v460 = vunpack.c.l.b16 %v428
        %v461 = vunpack.c.l.b16 %v429
        %v462 = vunpack.c.l.b16 %v430
        %v463 = vunpack.c.l.b16 %v431
        %v464 = vunpack.c.l.b16 %v432
        %v465 = vunpack.c.l.b16 %v433
        %v466 = vpack.c.b16 %v451, %v450
        %v467 = vpack.c.b16 %v453, %v452
        %v468 = vpack.c.b16 %v455, %v454
        %v469 = vpack.c.b16 %v457, %v456
        %v470 = vpack.c.b16 %v459, %v458
        %v471 = vpack.c.b16 %v461, %v460
        %v472 = vpack.c.b16 %v463, %v462
        %v473 = vpack.c.b16 %v465, %v464
        %482 = vmatprep.subr.bf16.mxu0 0
        %483 = vmatpush1.bf16.msra.mxu0 %v473
        %484 = vmatprep.subr.bf16.mxu0 0
        %485 = vmatpush1.bf16.msra.mxu0 %v472
        %486 = vmatprep.subr.bf16.mxu0 0
        %487 = vmatpush1.bf16.msra.mxu0 %v471
        %488 = vmatprep.subr.bf16.mxu0 0
        %489 = vmatpush1.bf16.msra.mxu0 %v470
        %490 = vmatprep.subr.bf16.mxu0 0
        %491 = vmatpush1.bf16.msra.mxu0 %v469
        %492 = vmatprep.subr.bf16.mxu0 0
        %493 = vmatpush1.bf16.msra.mxu0 %v468
        %494 = vmatprep.subr.bf16.mxu0 0
        %495 = vmatpush1.bf16.msra.mxu0 %v467
        %496 = vmatprep.subr.bf16.mxu0 0
        %497 = vmatpush1.bf16.msra.mxu0 %v466
        %498 = vmatprep.subr.bf16.mxu0 0
        %499 = vmatpush2.bf16.msra.mxu0 0
        %500 = vmatprep.subr.bf16.mxu0 0
        %501 = vmatpush2.bf16.msra.mxu0 0
        %502 = vmatprep.subr.bf16.mxu0 0
        %503 = vmatpush2.bf16.msra.mxu0 0
        %504 = vmatprep.subr.bf16.mxu0 0
        %505 = vmatpush2.bf16.msra.mxu0 0
        %506 = vmatprep.subr.bf16.mxu0 0
        %507 = vmatpush2.bf16.msra.mxu0 0
        %508 = vmatprep.subr.bf16.mxu0 0
        %509 = vmatpush2.bf16.msra.mxu0 0
        %510 = vmatprep.subr.bf16.mxu0 0
        %511 = vmatpush2.bf16.msra.mxu0 0
        %512 = vmatprep.subr.bf16.mxu0 0
        %513 = vmatpush2.bf16.msra.mxu0 0
        %514 = vmatprep.mubr.bf16.mxu0 0
        %515 = vmatmul.mubr.bf16.gmra.mxu0 %v417
        %v516 = vpop.f32.mrf.mxu0
        %v517 = vadd.f32 0.0, %v516
        %v518 = vpop.f32.mrf.mxu0
        %v519 = vpop.f32.mrf.mxu0
        %v520 = vpop.f32.mrf.mxu0
        %521 = vdwg.mxu0
        %v522 = vadd.f32 %v416, %v517
        %523 = vst [vmem:[#allocation2] sm:$0xff] %v522
        // Predicated region
        $region53: #{_mlp_forward_impl.1} parent=39 // pred_check
          %p524 = pneg %p293
        $region54: #{_mlp_forward_impl.1} parent=39 // pred_check_branch
          %526 = sbr.rel (%p524) target = $region56
        $region55: #{_mlp_forward_impl.1} parent=39 // pred_region
          %v527 = vld [vmem:[#allocation2] sm:$0xff]
          %v528 = vld [vmem:[%s4] sm:$0x1]
          %v530 = vlaneseq
          %v531 = vshrl.u32 %v530, 7
          %v532 = vsub.s32 0, %v531
          %v533 = vrot.slane %v528, %v532
          %v535 = vadd.f32 %v527, %v533
          %536 = vst [vmem:[%s291] sm:$0xff] %v535
        $region56: #{_mlp_forward_impl.1} parent=39 // pred_fallthru
          _
        %p537 = scmp.lt.s32.totalorder %s22, 1
        %s538 = scalar_select %p537, %s22, 1
        %s539 = smul.addr %s538, 8
        %s540 = scalar_lea.vmem %s5, %s539
        // Predicated region
        $region57: #{_mlp_forward_impl.1} parent=39 // pred_check
          %p541 = pneg %p173
        $region58: #{_mlp_forward_impl.1} parent=39 // pred_check_branch
          %543 = sbr.rel (%p541) target = $region60
        $region59: #{_mlp_forward_impl.1} parent=39 // pred_region
          _
        $region60: #{_mlp_forward_impl.1} parent=39 // pred_fallthru
          _
      $region40: #{_mlp_forward_impl.1} parent=5 // pred_fallthru
        _
      %p544 = scmp.le.s32.totalorder 2, %s13
      // Predicated region
      $region61: #{_mlp_forward_impl.1} parent=5 // pred_check
        %p545 = pneg %p544
      $region62: #{_mlp_forward_impl.1} parent=5 // pred_check_branch
        %547 = sbr.rel (%p545) target = $region64
      $region63: #{_mlp_forward_impl.1} parent=5 // pred_region
        %s548 = ssub.s32 %s13, 2
        // Predicated region
        $region65: #{_mlp_forward_impl.1} parent=63 // pred_check
          %p549 = pneg %p179
        $region66: #{_mlp_forward_impl.1} parent=63 // pred_check_branch
          %551 = sbr.rel (%p549) target = $region68
        $region67: #{_mlp_forward_impl.1} parent=63 // pred_region
          %p552 = scmp.lt.s32.totalorder %s24, 1
          %s553 = scalar_select %p552, %s24, 1
          %s554 = smul.addr %s553, 8
          %s555 = scalar_lea.vmem %s5, %s554
        $region68: #{_mlp_forward_impl.1} parent=63 // pred_fallthru
          _
      $region64: #{_mlp_forward_impl.1} parent=5 // pred_fallthru
        _
    $region6: #{_mlp_forward_impl.1} parent=1 // loop_footer
      %s17 = sadd.s32 1, %s13
    $region7: #{_mlp_forward_impl.1} parent=1 // loop_footer_branch
      %12 = sbr.rel target = $region3
    $region8: #{_mlp_forward_impl.1} parent=1 // loop_exit
      _
    %556 = vsyncpa [#allocation4], 1
    %s557 = scalar_lea.sflag [#allocation4], 1
    %558 = vsyncpa %s557, 1
    %559 = vsyncpa [#allocation6], 1

</llo_original>
